<compile_context>
chip_gen: v5e
topology: v5e:2x2
jax: 0.10.0
libtpu: 0.0.40
codegen_flags: <defaults>
</compile_context>

<pallas_src>
import math
import functools
import jax
import jax.numpy as jnp
from jax import lax
from jax.experimental import pallas as pl
from jax.experimental.pallas import tpu as pltpu


# ----------------------------- schedule (plain JAX glue) ---------------------
def cosine_beta_schedule(timesteps, s=0.008):
    steps = timesteps + 1
    x = jnp.linspace(0.0, float(steps), steps, dtype=jnp.float32)
    alphas_cumprod = jnp.cos(((x / steps) + s) / (1 + s) * jnp.pi * 0.5) ** 2
    alphas_cumprod = alphas_cumprod / alphas_cumprod[0]
    betas = 1.0 - alphas_cumprod[1:] / alphas_cumprod[:-1]
    return jnp.clip(betas, 0.0, 0.999)


def make_diffusion_buffers(timesteps):
    betas = cosine_beta_schedule(timesteps)
    alphas = 1.0 - betas
    alphas_cumprod = jnp.cumprod(alphas, axis=0)
    return jnp.sqrt(alphas_cumprod), jnp.sqrt(1.0 - alphas_cumprod)


# ----------------------------- tiling helpers ---------------------------------
def _pick_row_tile(bc, c):
    """Rows per block: whole batch elements, 8-sublane dense when possible."""
    r = (c * 8) // math.gcd(c, 8)          # lcm(C, 8)
    if bc % r == 0:
        return r
    return bc                               # full-extent fallback (always valid)


def _pick_lane_tile(hw):
    """Lane-dense tile dividing HW; prefers >=2 grid steps (megacore) and
    larger tiles for big images to amortize per-step overhead."""
    if hw % 128 != 0:
        return hw                           # full-extent fallback (perf cliff only)
    candidates = (32768, 16384, 8192, 4096, 2048, 1024, 512, 256, 128)
    for cand in candidates:                 # largest tile that still gives >=2 steps
        if hw % cand == 0 and hw // cand >= 2:
            return cand
    for cand in candidates:                 # otherwise largest tile that divides
        if hw % cand == 0:
            return cand
    return hw


# ----------------------------- Pallas kernel ---------------------------------
def _diffusion_loss_kernel(sa_ref, so_ref, b_ref, m_ref,   # tiny VMEM params
                           x_ref, nz_ref,                  # (R, L) data tiles
                           out_ref,                        # (R, F) partial sums
                           *, R, chunk, n_chunks, F, n_fold):
    # Hoist scalar-column -> lane broadcasts once per grid step (no CSE in loop).
    sa_b = jnp.broadcast_to(sa_ref[...], (R, chunk))       # sqrt_alphas_cumprod[t_b]
    so_b = jnp.broadcast_to(so_ref[...], (R, chunk))       # sqrt_one_minus_...[t_b]
    bias_b = jnp.broadcast_to(b_ref[...], (R, chunk))      # bias[o]
    m = m_ref[...]                                         # block_diag(W) (R, R)

    def body(k, acc):
        start = pl.multiple_of(k * chunk, F)
        xc = x_ref[:, pl.ds(start, chunk)].astype(jnp.float32)
        nc = nz_ref[:, pl.ds(start, chunk)].astype(jnp.float32)
        # q_sample (dense VPU FMAs)
        xn = sa_b * xc + so_b * nc
        # denoise_fn (1x1 conv) as a block-diagonal matmul on the MXU
        rec = jnp.dot(m, xn, preferred_element_type=jnp.float32) + bias_b
        # l1 loss contribution, folded lane-dense to (R, F)
        diff = jnp.abs(nc - rec)
        part = diff[:, 0:F]
        for f in range(1, n_fold):
            part = part + diff[:, f * F:(f + 1) * F]
        return acc + part

    acc = lax.fori_loop(0, n_chunks, body,
                        jnp.zeros((R, F), jnp.float32),
                        unroll=(n_chunks <= 8))
    out_ref[...] = acc                                     # one dense store


def gaussian_diffusion_loss(x, t, noise, w, bias, sqrt_ac, sqrt_1m_ac):
    """x, noise: (B, C, H, W); t: (B,) int32; w: (C, C); bias: (C,)."""
    B, C, H, W = x.shape
    HW = H * W
    BC = B * C

    # Keep native dtype for the big arrays; upcast happens inside the kernel.
    xr = x.reshape(BC, HW)
    nr = noise.reshape(BC, HW)

    # extract(...) == per-batch scalar gather (glue).
    sa = sqrt_ac[t].astype(jnp.float32)                     # (B,)
    so = sqrt_1m_ac[t].astype(jnp.float32)                  # (B,)

    R = _pick_row_tile(BC, C)                               # rows per block
    L = _pick_lane_tile(HW)                                 # lanes per block
    G0, G1 = BC // R, HW // L
    groups = R // C                                         # batch elements / block

    if L % 128 == 0:
        chunk = min(512, L)                                 # streaming chunk width
        F = 128                                             # folded partial width
    else:
        chunk = L                                           # non-aligned fallback
        F = L
    n_chunks = L // chunk
    n_fold = chunk // F

    # Tiny per-row parameter columns and block-diagonal mixing matrix.
    sa_rows = jnp.repeat(sa, C).reshape(BC, 1)              # sa[row // C]
    so_rows = jnp.repeat(so, C).reshape(BC, 1)
    bias_rows = jnp.tile(bias.astype(jnp.float32), B).reshape(BC, 1)
    m_block = jnp.kron(jnp.eye(groups, dtype=jnp.float32),
                       w.astype(jnp.float32))               # (R, R)

    kernel = functools.partial(_diffusion_loss_kernel,
                               R=R, chunk=chunk, n_chunks=n_chunks,
                               F=F, n_fold=n_fold)

    partials = pl.pallas_call(
        kernel,
        out_shape=jax.ShapeDtypeStruct((BC, G1 * F), jnp.float32),
        grid_spec=pltpu.PrefetchScalarGridSpec(
            num_scalar_prefetch=0,
            grid=(G0, G1),
            in_specs=[
                pl.BlockSpec((R, 1), lambda i, j: (i, 0)),   # sa column
                pl.BlockSpec((R, 1), lambda i, j: (i, 0)),   # so column
                pl.BlockSpec((R, 1), lambda i, j: (i, 0)),   # bias column
                pl.BlockSpec((R, R), lambda i, j: (0, 0)),   # block-diag W (resident)
                pl.BlockSpec((R, L), lambda i, j: (i, j)),   # x rows
                pl.BlockSpec((R, L), lambda i, j: (i, j)),   # noise rows
            ],
            out_specs=pl.BlockSpec((R, F), lambda i, j: (i, j)),
        ),
        compiler_params=pltpu.CompilerParams(
            dimension_semantics=("parallel", "parallel"),
            vmem_limit_bytes=32 * 1024 * 1024),
    )(sa_rows, so_rows, bias_rows, m_block, xr, nr)

    return jnp.sum(partials) / jnp.float32(B * C * H * W)


# ----------------------------- reference (pure JAX) ---------------------------
def _reference_loss(x, t, noise, w, bias, sqrt_ac, sqrt_1m_ac):
    B = x.shape[0]
    sa = sqrt_ac[t].reshape(B, 1, 1, 1)
    so = sqrt_1m_ac[t].reshape(B, 1, 1, 1)
    x_noisy = sa * x + so * noise
    x_recon = jnp.einsum("oc,bchw->bohw", w, x_noisy) + bias.reshape(1, -1, 1, 1)
    return jnp.mean(jnp.abs(noise - x_recon))


# ----------------------------- main -------------------------------------------
if __name__ == "__main__":
    B, C, H, W = 2, 4, 16, 16
    TIMESTEPS = 1000

    key = jax.random.PRNGKey(0)
    k_x, k_noise, k_t, k_w, k_b = jax.random.split(key, 5)

    x = jax.random.normal(k_x, (B, C, H, W), dtype=jnp.float32)
    noise = jax.random.normal(k_noise, (B, C, H, W), dtype=jnp.float32)
    t = jax.random.randint(k_t, (B,), 0, TIMESTEPS, dtype=jnp.int32)

    # deterministic synthetic denoise_fn parameters (1x1 conv)
    w = 0.1 * jax.random.normal(k_w, (C, C), dtype=jnp.float32)
    bias = 0.05 * jax.random.normal(k_b, (C,), dtype=jnp.float32)

    sqrt_ac, sqrt_1m_ac = make_diffusion_buffers(TIMESTEPS)

    loss = gaussian_diffusion_loss(x, t, noise, w, bias, sqrt_ac, sqrt_1m_ac)
    loss = jax.block_until_ready(loss)

    ref = _reference_loss(x, t, noise, w, bias, sqrt_ac, sqrt_1m_ac)
    assert jnp.allclose(loss, ref, rtol=1e-5, atol=1e-5), (loss, ref)

    # TODO(synk): denoise_fn is an arbitrary external nn.Module in the original
    # code; modeled here as a deterministic 1x1 conv. p_sample / p_sample_loop /
    # sample / interpolate (inference loops with torch.randn under no_grad) are
    # not part of forward() and are not ported.

    print("KERNEL_OK")
</pallas_src>

<mosaic_0001>
module attributes {stable_mosaic.version = 11 : i64} {
  func.func @_diffusion_loss_kernel(%arg0: i32, %arg1: i32, %arg2: memref<8x1xf32, #tpu.memory_space<vmem>>, %arg3: memref<8x1xf32, #tpu.memory_space<vmem>>, %arg4: memref<8x1xf32, #tpu.memory_space<vmem>>, %arg5: memref<8x8xf32, #tpu.memory_space<vmem>>, %arg6: memref<8x128xf32, #tpu.memory_space<vmem>>, %arg7: memref<8x128xf32, #tpu.memory_space<vmem>>, %arg8: memref<8x128xf32, #tpu.memory_space<vmem>>) attributes {dimension_semantics = [#tpu.dimension_semantics<parallel>, #tpu.dimension_semantics<parallel>], iteration_bounds = array<i64: 1, 2>, scalar_prefetch = 0 : i64, scratch_operands = 0 : i64, tpu.core_type = #tpu.core_type<tc>, window_params = [{transform_indices = @transform_0, window_bounds = array<i64: 8, 1>}, {transform_indices = @transform_1, window_bounds = array<i64: 8, 1>}, {transform_indices = @transform_2, window_bounds = array<i64: 8, 1>}, {pipeline_mode = #tpu.pipeline_mode<synchronous>, transform_indices = @transform_3, window_bounds = array<i64: 8, 8>}, {transform_indices = @transform_4, window_bounds = array<i64: 8, 128>}, {transform_indices = @transform_5, window_bounds = array<i64: 8, 128>}, {transform_indices = @transform_6, window_bounds = array<i64: 8, 128>}]} {
    %c0 = arith.constant 0 : index
    %c0_0 = arith.constant 0 : index
    %0 = vector.load %arg2[%c0, %c0_0] : memref<8x1xf32, #tpu.memory_space<vmem>>, vector<8x1xf32>
    %1 = vector.shape_cast %0 : vector<8x1xf32> to vector<8x1xf32>
    %2 = vector.broadcast %1 : vector<8x1xf32> to vector<8x128xf32>
    %c0_1 = arith.constant 0 : index
    %c0_2 = arith.constant 0 : index
    %3 = vector.load %arg3[%c0_1, %c0_2] : memref<8x1xf32, #tpu.memory_space<vmem>>, vector<8x1xf32>
    %4 = vector.shape_cast %3 : vector<8x1xf32> to vector<8x1xf32>
    %5 = vector.broadcast %4 : vector<8x1xf32> to vector<8x128xf32>
    %c0_3 = arith.constant 0 : index
    %c0_4 = arith.constant 0 : index
    %6 = vector.load %arg4[%c0_3, %c0_4] : memref<8x1xf32, #tpu.memory_space<vmem>>, vector<8x1xf32>
    %7 = vector.shape_cast %6 : vector<8x1xf32> to vector<8x1xf32>
    %8 = vector.broadcast %7 : vector<8x1xf32> to vector<8x128xf32>
    %c0_5 = arith.constant 0 : index
    %c0_6 = arith.constant 0 : index
    %9 = vector.load %arg5[%c0_5, %c0_6] : memref<8x8xf32, #tpu.memory_space<vmem>>, vector<8x8xf32>
    %cst = arith.constant 0.000000e+00 : f32
    %10 = vector.broadcast %cst : f32 to vector<8x128xf32>
    %c0_i32 = arith.constant 0 : i32
    %c128_i32 = arith.constant 128 : i32
    %11 = arith.muli %c0_i32, %c128_i32 : i32
    %12 = tpu.assume_multiple %11, 128 : i32
    %c0_7 = arith.constant 0 : index
    %13 = arith.index_cast %12 : i32 to index
    %14 = vector.load %arg6[%c0_7, %13] : memref<8x128xf32, #tpu.memory_space<vmem>>, vector<8x128xf32>
    %c0_8 = arith.constant 0 : index
    %15 = arith.index_cast %12 : i32 to index
    %16 = vector.load %arg7[%c0_8, %15] : memref<8x128xf32, #tpu.memory_space<vmem>>, vector<8x128xf32>
    %17 = arith.mulf %2, %14 : vector<8x128xf32>
    %18 = arith.mulf %5, %16 : vector<8x128xf32>
    %19 = arith.addf %17, %18 : vector<8x128xf32>
    %cst_9 = arith.constant dense<0.000000e+00> : vector<8x128xf32>
    %20 = tpu.matmul %9, %19, %cst_9 {dimension_numbers = #tpu.dot_dimension_numbers<[1], [0], [0], [1], [0, 0, 1, 1], [], []>} : vector<8x8xf32>, vector<8x128xf32>, vector<8x128xf32> -> vector<8x128xf32>
    %21 = arith.addf %20, %8 : vector<8x128xf32>
    %22 = arith.subf %16, %21 : vector<8x128xf32>
    %23 = math.absf %22 : vector<8x128xf32>
    %24 = arith.addf %10, %23 : vector<8x128xf32>
    %c1_i32 = arith.constant 1 : i32
    %c0_10 = arith.constant 0 : index
    %c0_11 = arith.constant 0 : index
    %25 = vector.load %arg8[%c0_10, %c0_11] : memref<8x128xf32, #tpu.memory_space<vmem>>, vector<8x128xf32>
    tpu.vector_store %arg8[%c0_10, %c0_11], %24 {strides = array<i32>} : memref<8x128xf32, #tpu.memory_space<vmem>>, vector<8x128xf32>,
    return
  }
  func.func @transform_0(%arg0: i32, %arg1: i32) -> (i32, i32) {
    %c0_i32 = arith.constant 0 : i32
    %c0_i32_0 = arith.constant 0 : i32
    return %arg0, %c0_i32 : i32, i32
  }
  func.func @transform_1(%arg0: i32, %arg1: i32) -> (i32, i32) {
    %c0_i32 = arith.constant 0 : i32
    %c0_i32_0 = arith.constant 0 : i32
    return %arg0, %c0_i32 : i32, i32
  }
  func.func @transform_2(%arg0: i32, %arg1: i32) -> (i32, i32) {
    %c0_i32 = arith.constant 0 : i32
    %c0_i32_0 = arith.constant 0 : i32
    return %arg0, %c0_i32 : i32, i32
  }
  func.func @transform_3(%arg0: i32, %arg1: i32) -> (i32, i32) {
    %c0_i32 = arith.constant 0 : i32
    %c0_i32_0 = arith.constant 0 : i32
    %c0_i32_1 = arith.constant 0 : i32
    return %c0_i32, %c0_i32_0 : i32, i32
  }
  func.func @transform_4(%arg0: i32, %arg1: i32) -> (i32, i32) {
    %c0_i32 = arith.constant 0 : i32
    return %arg0, %arg1 : i32, i32
  }
  func.func @transform_5(%arg0: i32, %arg1: i32) -> (i32, i32) {
    %c0_i32 = arith.constant 0 : i32
    return %arg0, %arg1 : i32, i32
  }
  func.func @transform_6(%arg0: i32, %arg1: i32) -> (i32, i32) {
    %c0_i32 = arith.constant 0 : i32
    return %arg0, %arg1 : i32, i32
  }
}

</mosaic_0001>

<llo_original>
// kernel: tpu_custom_call.1
$region0: #{tpu_custom_call.1}
  #allocation0 [shape = 'u32[]', space=smem, size = 0x4, offset = 0x4, fixed_abs, tag = 'smem constant byte address 0x4 - core index']
  #allocation1 [shape = 'u32[72,128]{1,0:T(1,128)}', space=vmem, size = 0x9000, scoped, tag = 'internal scratch']
  %s0 = inlined_call_operand.vmem [shape: f32[8,1], index: 0, kind: input, shape index: {}]
  %s1 = inlined_call_operand.vmem [shape: f32[8,1], index: 1, kind: input, shape index: {}]
  %s2 = inlined_call_operand.vmem [shape: f32[8,1], index: 2, kind: input, shape index: {}]
  %s3 = inlined_call_operand.vmem [shape: f32[8,8], index: 3, kind: input, shape index: {}]
  %s4 = inlined_call_operand.vmem [shape: f32[8,256], index: 4, kind: input, shape index: {}]
  %s5 = inlined_call_operand.hbm [shape: f32[8,256], index: 5, kind: input, shape index: {}]
  %s6 = inlined_call_operand.hbm [shape: f32[8,256], index: 6, kind: output, shape index: {}]
  %s7 = sld [smem:[#allocation0]]
  $region61: #{tpu_custom_call.1} parent=0
    _
  %s9 = ssub.s32 1, %s7
  %s10 = scalar_select 0, %s9, %s7
  $region1: #{tpu_custom_call.1} parent=0
    #allocation2 [shape = 'u8[8192]{0}', space=vmem, size = 0x2000, scoped, tag = 'input window, operand 5']
    #allocation3 [shape = 's32[2]{0}', space=sflag, size = 0x8, scoped, tag = 'scoped memory for tpu_custom_call.1']
    #allocation4 [shape = 's32[2]{0}', space=sflag, size = 0x8, scoped, tag = 'scoped memory for tpu_custom_call.1']
    #allocation5 [shape = 'u8[8192]{0}', space=vmem, size = 0x2000, scoped, tag = 'output window, operand 0']
    %11 = vsyncpa [#allocation3], 0
    %s12 = scalar_lea.sflag [#allocation3], 1
    %13 = vsyncpa %s12, 0
    %14 = vsyncpa [#allocation4], 0
    %s15 = scalar_lea.sflag [#allocation4], 1
    %16 = vsyncpa %s15, 0
    loop: start=0, step=1, limit=4
    $region2: #{tpu_custom_call.1} parent=1 // loop_pre_header
      _
    $region3: #{tpu_custom_call.1} parent=1 // loop_header
      %s18 = sphi 0, %s22
      %p19 = scmp.ge.s32.totalorder %s18, 4
      %s25 = sphi 0, %s37
      %s26 = sphi 0, %s33
      %s27 = sphi 0, %s25
      %s28 = sphi 0, %s26
      %s29 = sphi 0, %s27
      %s30 = sphi 0, %s28
      %s40 = sphi 0, %s42
      %s43 = sphi 0, %s40
      %s44 = sphi 0, %s43
      %s60 = sphi 0, %s44
      %s66 = sphi 0, %s68
      %s69 = sphi 0, %s66
      %s70 = sphi 0, %s69
      %s86 = sphi 0, %s70
      %s92 = sphi 0, %s94
      %s95 = sphi 0, %s92
      %s96 = sphi 0, %s95
      %s112 = sphi 0, %s96
      %s116 = sphi 0, %s116
      %s118 = sphi 0, %s116
      %s119 = sphi 0, %s118
      %s133 = sphi 0, %s119
      %s141 = sphi 0, %s143
      %s144 = sphi 0, %s141
      %s145 = sphi 0, %s144
      %s161 = sphi 0, %s145
      %s169 = sphi 0, %s171
      %s172 = sphi 0, %s169
      %s173 = sphi 0, %s172
      %s189 = sphi 0, %s173
      %s197 = sphi 0, %s199
      %s200 = sphi 0, %s197
      %s201 = sphi 0, %s200
      %s217 = sphi 0, %s201
    $region4: #{tpu_custom_call.1} parent=1 // loop_header_branch
      %21 = sbr.rel (%p19) target = $region8
    $region5: #{tpu_custom_call.1} parent=1 // loop_body
      %s23 = ssub.s32 %s18, 1
      %s24 = ssub.s32 %s18, 2
      %s31 = sadd.s32 1, %s26
      %p32 = scmp.ge.s32.totalorder %s31, 2
      %s33 = scalar_select %p32, 0, %s31
      %s34 = sadd.s32 1, %s25
      %s35 = scalar_select %p32, %s34, %s25
      %p36 = scmp.ge.s32.totalorder %s35, 1
      %s37 = scalar_select %p36, 0, %s35
      %s38 = ssub.s32 %s25, %s37
      %p39 = scmp.eq.s32.totalorder %s38, 0
      %s41 = sadd.s32 %s40, 1
      %s42 = scalar_select %p39, %s40, %s41
      %p45 = pneg %p39
      %p46 = scmp.eq.s32.totalorder %s18, 1
      %p47 = por %p45, %p46
      %p48 = scmp.ne.s32.totalorder %s40, %s43
      %p49 = scmp.eq.s32.totalorder %s18, 0
      %p50 = por %p48, %p49
      %p51 = scmp.ne.s32.totalorder %s40, %s43
      %p52 = scmp.eq.s32.totalorder %s23, 1
      %p53 = por %p51, %p52
      %p54 = scmp.ne.s32.totalorder %s43, %s44
      %p55 = scmp.eq.s32.totalorder %s23, 0
      %p56 = por %p54, %p55
      %p57 = scmp.ne.s32.totalorder %s43, %s44
      %p58 = scmp.eq.s32.totalorder %s24, 1
      %p59 = por %p57, %p58
      %p61 = scmp.ne.s32.totalorder %s44, %s60
      %p62 = scmp.eq.s32.totalorder %s24, 0
      %p63 = por %p61, %p62
      %s64 = ssub.s32 %s25, %s37
      %p65 = scmp.eq.s32.totalorder %s64, 0
      %s67 = sadd.s32 %s66, 1
      %s68 = scalar_select %p65, %s66, %s67
      %p71 = pneg %p65
      %p72 = scmp.eq.s32.totalorder %s18, 1
      %p73 = por %p71, %p72
      %p74 = scmp.ne.s32.totalorder %s66, %s69
      %p75 = scmp.eq.s32.totalorder %s18, 0
      %p76 = por %p74, %p75
      %p77 = scmp.ne.s32.totalorder %s66, %s69
      %p78 = scmp.eq.s32.totalorder %s23, 1
      %p79 = por %p77, %p78
      %p80 = scmp.ne.s32.totalorder %s69, %s70
      %p81 = scmp.eq.s32.totalorder %s23, 0
      %p82 = por %p80, %p81
      %p83 = scmp.ne.s32.totalorder %s69, %s70
      %p84 = scmp.eq.s32.totalorder %s24, 1
      %p85 = por %p83, %p84
      %p87 = scmp.ne.s32.totalorder %s70, %s86
      %p88 = scmp.eq.s32.totalorder %s24, 0
      %p89 = por %p87, %p88
      %s90 = ssub.s32 %s25, %s37
      %p91 = scmp.eq.s32.totalorder %s90, 0
      %s93 = sadd.s32 %s92, 1
      %s94 = scalar_select %p91, %s92, %s93
      %p97 = pneg %p91
      %p98 = scmp.eq.s32.totalorder %s18, 1
      %p99 = por %p97, %p98
      %p100 = scmp.ne.s32.totalorder %s92, %s95
      %p101 = scmp.eq.s32.totalorder %s18, 0
      %p102 = por %p100, %p101
      %p103 = scmp.ne.s32.totalorder %s92, %s95
      %p104 = scmp.eq.s32.totalorder %s23, 1
      %p105 = por %p103, %p104
      %p106 = scmp.ne.s32.totalorder %s95, %s96
      %p107 = scmp.eq.s32.totalorder %s23, 0
      %p108 = por %p106, %p107
      %p109 = scmp.ne.s32.totalorder %s95, %s96
      %p110 = scmp.eq.s32.totalorder %s24, 1
      %p111 = por %p109, %p110
      %p113 = scmp.ne.s32.totalorder %s96, %s112
      %p114 = scmp.eq.s32.totalorder %s24, 0
      %p115 = por %p113, %p114
      %s117 = sadd.s32 %s116, 1
      %p120 = scmp.eq.s32.totalorder %s18, 1
      %p121 = scmp.ne.s32.totalorder %s116, %s118
      %p122 = scmp.eq.s32.totalorder %s18, 0
      %p123 = por %p121, %p122
      %p124 = scmp.ne.s32.totalorder %s116, %s118
      %p125 = scmp.eq.s32.totalorder %s23, 1
      %p126 = por %p124, %p125
      %p127 = scmp.ne.s32.totalorder %s118, %s119
      %p128 = scmp.eq.s32.totalorder %s23, 0
      %p129 = por %p127, %p128
      %p130 = scmp.ne.s32.totalorder %s118, %s119
      %p131 = scmp.eq.s32.totalorder %s24, 1
      %p132 = por %p130, %p131
      %p134 = scmp.ne.s32.totalorder %s119, %s133
      %p135 = scmp.eq.s32.totalorder %s24, 0
      %p136 = por %p134, %p135
      %s137 = ssub.s32 %s25, %s37
      %s138 = ssub.s32 %s26, %s33
      %s139 = sor.u32 %s137, %s138
      %p140 = scmp.eq.s32.totalorder %s139, 0
      %s142 = sadd.s32 %s141, 1
      %s143 = scalar_select %p140, %s141, %s142
      %p146 = pneg %p140
      %p147 = scmp.eq.s32.totalorder %s18, 1
      %p148 = por %p146, %p147
      %p149 = scmp.ne.s32.totalorder %s141, %s144
      %p150 = scmp.eq.s32.totalorder %s18, 0
      %p151 = por %p149, %p150
      %p152 = scmp.ne.s32.totalorder %s141, %s144
      %p153 = scmp.eq.s32.totalorder %s23, 1
      %p154 = por %p152, %p153
      %p155 = scmp.ne.s32.totalorder %s144, %s145
      %p156 = scmp.eq.s32.totalorder %s23, 0
      %p157 = por %p155, %p156
      %p158 = scmp.ne.s32.totalorder %s144, %s145
      %p159 = scmp.eq.s32.totalorder %s24, 1
      %p160 = por %p158, %p159
      %p162 = scmp.ne.s32.totalorder %s145, %s161
      %p163 = scmp.eq.s32.totalorder %s24, 0
      %p164 = por %p162, %p163
      %s165 = ssub.s32 %s25, %s37
      %s166 = ssub.s32 %s26, %s33
      %s167 = sor.u32 %s165, %s166
      %p168 = scmp.eq.s32.totalorder %s167, 0
      %s170 = sadd.s32 %s169, 1
      %s171 = scalar_select %p168, %s169, %s170
      %p174 = pneg %p168
      %p175 = scmp.eq.s32.totalorder %s18, 1
      %p176 = por %p174, %p175
      %p177 = scmp.ne.s32.totalorder %s169, %s172
      %p178 = scmp.eq.s32.totalorder %s18, 0
      %p179 = por %p177, %p178
      %p180 = scmp.ne.s32.totalorder %s169, %s172
      %p181 = scmp.eq.s32.totalorder %s23, 1
      %p182 = por %p180, %p181
      %p183 = scmp.ne.s32.totalorder %s172, %s173
      %p184 = scmp.eq.s32.totalorder %s23, 0
      %p185 = por %p183, %p184
      %p186 = scmp.ne.s32.totalorder %s172, %s173
      %p187 = scmp.eq.s32.totalorder %s24, 1
      %p188 = por %p186, %p187
      %p190 = scmp.ne.s32.totalorder %s173, %s189
      %p191 = scmp.eq.s32.totalorder %s24, 0
      %p192 = por %p190, %p191
      %s193 = ssub.s32 %s25, %s37
      %s194 = ssub.s32 %s26, %s33
      %s195 = sor.u32 %s193, %s194
      %p196 = scmp.eq.s32.totalorder %s195, 0
      %s198 = sadd.s32 %s197, 1
      %s199 = scalar_select %p196, %s197, %s198
      %p202 = pneg %p196
      %p203 = scmp.eq.s32.totalorder %s18, 1
      %p204 = por %p202, %p203
      %p205 = scmp.ne.s32.totalorder %s197, %s200
      %p206 = scmp.eq.s32.totalorder %s18, 0
      %p207 = por %p205, %p206
      %p208 = scmp.ne.s32.totalorder %s197, %s200
      %p209 = scmp.eq.s32.totalorder %s23, 1
      %p210 = por %p208, %p209
      %p211 = scmp.ne.s32.totalorder %s200, %s201
      %p212 = scmp.eq.s32.totalorder %s23, 0
      %p213 = por %p211, %p212
      %p214 = scmp.ne.s32.totalorder %s200, %s201
      %p215 = scmp.eq.s32.totalorder %s24, 1
      %p216 = por %p214, %p215
      %p218 = scmp.ne.s32.totalorder %s201, %s217
      %p219 = scmp.eq.s32.totalorder %s24, 0
      %p220 = por %p218, %p219
      %p221 = scmp.le.s32.totalorder 1, %s18
      %p222 = scmp.lt.s32.totalorder %s18, 3
      %p223 = pnand %p221, %p222
      %p224 = pneg %p223
      // Predicated region
      $region9: #{tpu_custom_call.1} parent=5 // pred_check
        _
      $region10: #{tpu_custom_call.1} parent=5 // pred_check_branch
        %226 = sbr.rel (%p223) target = $region12
      $region11: #{tpu_custom_call.1} parent=5 // pred_region
        %s227 = ssub.s32 %s18, 1
        // Predicated region
        $region13: #{tpu_custom_call.1} parent=11 // pred_check
          %p228 = pneg %p56
        $region14: #{tpu_custom_call.1} parent=11 // pred_check_branch
          %230 = sbr.rel (%p228) target = $region16
        $region15: #{tpu_custom_call.1} parent=11 // pred_region
          %p231 = scmp.lt.s32.totalorder %s27, 0
          %s232 = scalar_select %p231, %s27, 0
          %s233 = smul.addr %s232, 8
          %s234 = scalar_lea.vmem %s0, %s233
        $region16: #{tpu_custom_call.1} parent=11 // pred_fallthru
          _
        // Predicated region
        $region17: #{tpu_custom_call.1} parent=11 // pred_check
          %p235 = pneg %p82
        $region18: #{tpu_custom_call.1} parent=11 // pred_check_branch
          %237 = sbr.rel (%p235) target = $region20
        $region19: #{tpu_custom_call.1} parent=11 // pred_region
          %p238 = scmp.lt.s32.totalorder %s27, 0
          %s239 = scalar_select %p238, %s27, 0
          %s240 = smul.addr %s239, 8
          %s241 = scalar_lea.vmem %s1, %s240
        $region20: #{tpu_custom_call.1} parent=11 // pred_fallthru
          _
        // Predicated region
        $region21: #{tpu_custom_call.1} parent=11 // pred_check
          %p242 = pneg %p108
        $region22: #{tpu_custom_call.1} parent=11 // pred_check_branch
          %244 = sbr.rel (%p242) target = $region24
        $region23: #{tpu_custom_call.1} parent=11 // pred_region
          %p245 = scmp.lt.s32.totalorder %s27, 0
          %s246 = scalar_select %p245, %s27, 0
          %s247 = smul.addr %s246, 8
          %s248 = scalar_lea.vmem %s2, %s247
        $region24: #{tpu_custom_call.1} parent=11 // pred_fallthru
          _
        // Predicated region
        $region25: #{tpu_custom_call.1} parent=11 // pred_check
          %p249 = pneg %p129
        $region26: #{tpu_custom_call.1} parent=11 // pred_check_branch
          %251 = sbr.rel (%p249) target = $region28
        $region27: #{tpu_custom_call.1} parent=11 // pred_region
          _
        $region28: #{tpu_custom_call.1} parent=11 // pred_fallthru
          _
      $region12: #{tpu_custom_call.1} parent=5 // pred_fallthru
        _
      %p252 = scmp.lt.s32.totalorder %s18, 2
      // Predicated region
      $region29: #{tpu_custom_call.1} parent=5 // pred_check
        %p253 = pneg %p252
      $region30: #{tpu_custom_call.1} parent=5 // pred_check_branch
        %255 = sbr.rel (%p253) target = $region32
      $region31: #{tpu_custom_call.1} parent=5 // pred_region
        // Predicated region
        $region33: #{tpu_custom_call.1} parent=31 // pred_check
          %p256 = pneg %p151
        $region34: #{tpu_custom_call.1} parent=31 // pred_check_branch
          %258 = sbr.rel (%p256) target = $region36
        $region35: #{tpu_custom_call.1} parent=31 // pred_region
          %p259 = scmp.lt.s32.totalorder %s25, 0
          %s260 = scalar_select %p259, %s25, 0
          %p261 = scmp.lt.s32.totalorder %s26, 1
          %s262 = scalar_select %p261, %s26, 1
          %s263 = smul.addr %s260, 2
          %s264 = sadd.s32 %s262, %s263
          %s265 = smul.addr %s264, 8
          %s266 = scalar_lea.vmem %s4, %s265
        $region36: #{tpu_custom_call.1} parent=31 // pred_fallthru
          _
        // Predicated region
        $region37: #{tpu_custom_call.1} parent=31 // pred_check
          %p267 = pneg %p179
        $region38: #{tpu_custom_call.1} parent=31 // pred_check_branch
          %269 = sbr.rel (%p267) target = $region40
        $region39: #{tpu_custom_call.1} parent=31 // pred_region
          %s270 = sand.u32 %s169, 1
          %s271 = scalar_lea.sflag [#allocation3], %s270
          %s272 = sand.u32 %s169, 1
          %s273 = smul.addr %s272, 8
          %s274 = scalar_lea.vmem [#allocation2], %s273
          %276 = vsyncadd %s271, 0
          %s277 = smul.addr %s25, 2
          %s278 = sadd.s32 %s26, %s277
          %s279 = smul.addr %s278, 8
          %s280 = scalar_lea.hbm %s5, %s279
          %s282 = sshll.u32 %s280, 4
          %s283 = int_to_ptr.hbm [resolvable:$true] %s282
          %s284 = sshll.u32 %s274, 4
          %s285 = int_to_ptr.vmem [resolvable:$true] %s284
          %287 = dma.hbm_to_vmem [thread:$0]  %s283, 128, %s285, %s271
        $region40: #{tpu_custom_call.1} parent=31 // pred_fallthru
          _
      $region32: #{tpu_custom_call.1} parent=5 // pred_fallthru
        _
      %p288 = scmp.le.s32.totalorder 1, %s18
      %p289 = scmp.lt.s32.totalorder %s18, 3
      %p290 = pnand %p288, %p289
      %p291 = pneg %p290
      // Predicated region
      $region41: #{tpu_custom_call.1} parent=5 // pred_check
        _
      $region42: #{tpu_custom_call.1} parent=5 // pred_check_branch
        %293 = sbr.rel (%p290) target = $region44
      $region43: #{tpu_custom_call.1} parent=5 // pred_region
        %s294 = ssub.s32 %s18, 1
        %s295 = sand.u32 %s172, 1
        %s296 = scalar_lea.sflag [#allocation3], %s295
        %s297 = sand.u32 %s172, 1
        %s298 = smul.addr %s297, 8
        %s299 = scalar_lea.vmem [#allocation2], %s298
        // Predicated region
        $region45: #{tpu_custom_call.1} parent=43 // pred_check
          %p300 = pneg %p185
        $region46: #{tpu_custom_call.1} parent=43 // pred_check_branch
          %302 = sbr.rel (%p300) target = $region48
        $region47: #{tpu_custom_call.1} parent=43 // pred_region
          %304 = dma.done %s296, 128
        $region48: #{tpu_custom_call.1} parent=43 // pred_fallthru
          _
        %p305 = scmp.lt.s32.totalorder %s27, 0
        %s306 = scalar_select %p305, %s27, 0
        %s307 = smul.addr %s306, 8
        %s308 = scalar_lea.vmem %s0, %s307
        %p309 = pneg %p56
        %p310 = pneg %p53
        %p311 = scmp.lt.s32.totalorder %s27, 0
        %s312 = scalar_select %p311, %s27, 0
        %s313 = smul.addr %s312, 8
        %s314 = scalar_lea.vmem %s1, %s313
        %p315 = pneg %p82
        %p316 = pneg %p79
        %p317 = scmp.lt.s32.totalorder %s27, 0
        %s318 = scalar_select %p317, %s27, 0
        %s319 = smul.addr %s318, 8
        %s320 = scalar_lea.vmem %s2, %s319
        %p321 = pneg %p108
        %p322 = pneg %p105
        %p323 = pneg %p129
        %p324 = pneg %p126
        %p325 = scmp.lt.s32.totalorder %s27, 0
        %s326 = scalar_select %p325, %s27, 0
        %p327 = scmp.lt.s32.totalorder %s28, 1
        %s328 = scalar_select %p327, %s28, 1
        %s329 = smul.addr %s326, 2
        %s330 = sadd.s32 %s328, %s329
        %s331 = smul.addr %s330, 8
        %s332 = scalar_lea.vmem %s4, %s331
        %p333 = pneg %p157
        %p334 = pneg %p154
        %s335 = sand.u32 %s172, 1
        %s336 = scalar_lea.sflag [#allocation3], %s335
        %s337 = sand.u32 %s172, 1
        %s338 = smul.addr %s337, 8
        %s339 = scalar_lea.vmem [#allocation2], %s338
        %p340 = pneg %p185
        %p341 = pneg %p182
        %p342 = pneg %p213
        %p343 = pneg %p210
        %s344 = sand.u32 %s200, 1
        %s345 = scalar_lea.sflag [#allocation4], %s344
        %s346 = sand.u32 %s200, 1
        %s347 = smul.addr %s346, 8
        %s348 = scalar_lea.vmem [#allocation5], %s347
        %p349 = scmp.lt.s32.totalorder %s27, 0
        %s350 = scalar_select %p349, %s27, 0
        %s351 = smul.addr %s350, 8
        %s352 = scalar_lea.vmem %s0, %s351
        %p353 = scmp.lt.s32.totalorder %s27, 0
        %s354 = scalar_select %p353, %s27, 0
        %s355 = smul.addr %s354, 8
        %s356 = scalar_lea.vmem %s1, %s355
        %p357 = scmp.lt.s32.totalorder %s27, 0
        %s358 = scalar_select %p357, %s27, 0
        %s359 = smul.addr %s358, 8
        %s360 = scalar_lea.vmem %s2, %s359
        %p361 = scmp.lt.s32.totalorder %s27, 0
        %s362 = scalar_select %p361, %s27, 0
        %p363 = scmp.lt.s32.totalorder %s28, 1
        %s364 = scalar_select %p363, %s28, 1
        %s365 = smul.addr %s362, 2
        %s366 = sadd.s32 %s364, %s365
        %s367 = smul.addr %s366, 8
        %s368 = scalar_lea.vmem %s4, %s367
        %v369 = vld [vmem:[%s352] sm:$0xff]
        %371 = vset.pattern.permute.xlu0 0
        %372 = vperm.xlu0 %371, %v369
        %v373 = vpop.permute.xlu0 %372
        %v375 = vld [vmem:[%s356] sm:$0xff]
        %377 = vset.pattern.permute.xlu0 0
        %378 = vperm.xlu0 %377, %v375
        %v379 = vpop.permute.xlu0 %378
        %v381 = vld [vmem:[%s360] sm:$0xff]
        %383 = vset.pattern.permute.xlu0 0
        %384 = vperm.xlu0 %383, %v381
        %v385 = vpop.permute.xlu0 %384
        %v387 = vld [vmem:[%s3] sm:$0xff]
        %v388 = vld [vmem:[%s368] sm:$0xff]
        %v389 = vld [vmem:[%s299] sm:$0xff]
        %v390 = vmul.f32 %v373, %v388
        %v391 = vmul.f32 %v379, %v389
        %v392 = vadd.f32 %v390, %v391
        %vm393 = vcmask 64512
        %v395 = vsel %vm393, %v387, 0
        %397 = vmatpush.msra.mxu0 0.0
        %398 = vmatpush.msra.mxu0 0.0
        %399 = vmatpush.msra.mxu0 0.0
        %400 = vmatpush.msra.mxu0 0.0
        %401 = vmatpush.msra.mxu0 0.0
        %402 = vmatpush.msra.mxu0 0.0
        %403 = vmatpush.msra.mxu0 0.0
        %404 = vmatpush.msra.mxu0 0.0
        %405 = vmatpush.msra.mxu0 0.0
        %406 = vmatpush.msra.mxu0 0.0
        %407 = vmatpush.msra.mxu0 0.0
        %408 = vmatpush.msra.mxu0 0.0
        %409 = vmatpush.msra.mxu0 0.0
        %410 = vmatpush.msra.mxu0 0.0
        %411 = vmatpush.msra.mxu0 0.0
        %412 = vmatpush.msra.mxu0 %v392
        %413 = vmatmul.f32.gmra.mxu0 %v395
        %v414 = vpop.f32.mrf.mxu0
        %v415 = vadd.f32 %v385, %v414
        %416 = vdwg.mxu0
        %v417 = vsub.f32 %v389, %v415
        %v418 = vand.u32 2147483647, %v417
        %v419 = vadd.f32 %v418, 0.0
        %420 = vst [vmem:[%s348] sm:$0xff] %v419
        %s421 = sand.u32 %s200, 1
        %s422 = scalar_lea.sflag [#allocation4], %s421
        %s423 = sand.u32 %s200, 1
        %s424 = smul.addr %s423, 8
        %s425 = scalar_lea.vmem [#allocation5], %s424
        // Predicated region
        $region49: #{tpu_custom_call.1} parent=43 // pred_check
          %p426 = pneg %p210
        $region50: #{tpu_custom_call.1} parent=43 // pred_check_branch
          %428 = sbr.rel (%p426) target = $region52
        $region51: #{tpu_custom_call.1} parent=43 // pred_region
          %430 = vsyncadd %s422, 0
          %s431 = smul.addr %s27, 2
          %s432 = sadd.s32 %s28, %s431
          %s433 = smul.addr %s432, 8
          %s434 = scalar_lea.hbm %s6, %s433
          %s436 = sshll.u32 %s425, 4
          %s437 = int_to_ptr.vmem [resolvable:$true] %s436
          %s438 = sshll.u32 %s434, 4
          %s439 = int_to_ptr.hbm [resolvable:$true] %s438
          %441 = dma.vmem_to_hbm [thread:$0]  %s437, 128, %s439, %s422
        $region52: #{tpu_custom_call.1} parent=43 // pred_fallthru
          _
      $region44: #{tpu_custom_call.1} parent=5 // pred_fallthru
        _
      %p442 = scmp.le.s32.totalorder 2, %s18
      // Predicated region
      $region53: #{tpu_custom_call.1} parent=5 // pred_check
        %p443 = pneg %p442
      $region54: #{tpu_custom_call.1} parent=5 // pred_check_branch
        %445 = sbr.rel (%p443) target = $region56
      $region55: #{tpu_custom_call.1} parent=5 // pred_region
        %s446 = ssub.s32 %s18, 2
        // Predicated region
        $region57: #{tpu_custom_call.1} parent=55 // pred_check
          %p447 = pneg %p216
        $region58: #{tpu_custom_call.1} parent=55 // pred_check_branch
          %449 = sbr.rel (%p447) target = $region60
        $region59: #{tpu_custom_call.1} parent=55 // pred_region
          %s450 = sand.u32 %s201, 1
          %s451 = scalar_lea.sflag [#allocation4], %s450
          %s452 = sand.u32 %s201, 1
          %s453 = smul.addr %s452, 8
          %s454 = scalar_lea.vmem [#allocation5], %s453
          %456 = dma.done %s451, 128
        $region60: #{tpu_custom_call.1} parent=55 // pred_fallthru
          _
      $region56: #{tpu_custom_call.1} parent=5 // pred_fallthru
        _
    $region6: #{tpu_custom_call.1} parent=1 // loop_footer
      %s22 = sadd.s32 1, %s18
    $region7: #{tpu_custom_call.1} parent=1 // loop_footer_branch
      %17 = sbr.rel target = $region3
    $region8: #{tpu_custom_call.1} parent=1 // loop_exit
      _
    %457 = vsyncpa [#allocation3], 1
    %s458 = scalar_lea.sflag [#allocation3], 1
    %459 = vsyncpa %s458, 1
    %460 = vsyncpa [#allocation4], 1
    %s461 = scalar_lea.sflag [#allocation4], 1
    %462 = vsyncpa %s461, 1

</llo_original>
